<compile_context>
chip_gen: v7x
topology: tpu7x:2x2x1
jax: 0.10.0
libtpu: 0.0.40
codegen_flags: <defaults>
</compile_context>

<pallas_src>
import functools

import jax
import jax.numpy as jnp
import numpy as np
from jax.experimental import pallas as pl
from jax.experimental.pallas import tpu as pltpu


def _vmem_capacity_bytes():
    try:
        return int(pltpu.get_tpu_info().vmem_capacity_bytes)
    except Exception:
        return 64 * 1024 * 1024   # conservative (v7x per-TC) fallback


def _loss_kernel(x_ref, t_ref, o_ref, *, num_channels, tile, q_total,
                 num_tiles, steps_per_core, needs_mask):
    c = pl.program_id(0)              # "core" (parallel) axis
    i = pl.program_id(1)              # streaming (arbitrary) axis
    g = c * steps_per_core + i        # global spatial tile index

    @pl.when(i == 0)
    def _init():
        o_ref[...] = jnp.zeros_like(o_ref)

    t = t_ref[...].astype(jnp.float32)            # (B, R, tile)
    nt = 1.0 - t

    if num_channels == 2:
        # 2-class softmax == sigmoid(x0 - x1); tanh form = single EUP op.
        d = x_ref[:, 0].astype(jnp.float32) - x_ref[:, 1].astype(jnp.float32)
        p0 = 0.5 * jnp.tanh(0.5 * d) + 0.5
        p0t = p0 * t
        p0nt = p0 - p0t                           # p0 * (1 - t)
        p1t = t - p0t                             # (1 - p0) * t
        p1nt = nt - p0nt                          # (1 - p0) * (1 - t)
    else:
        # General C: stable softmax over the channel axis, unrolled (C small).
        xs = [x_ref[:, ch].astype(jnp.float32) for ch in range(num_channels)]
        m = xs[0]
        for xc in xs[1:]:
            m = jnp.maximum(m, xc)
        es = [jnp.exp(xc - m) for xc in xs]
        den = es[0]
        for e in es[1:]:
            den = den + e
        inv = 1.0 / den
        p0 = es[0] * inv
        p1 = es[1] * inv
        p0t, p0nt, p1t, p1nt = p0 * t, p0 * nt, p1 * t, p1 * nt

    # The five accumulated quantities (order matters for the wrapper).
    terms = (t, p0nt, p1t, p0t * p0t, p1nt * p1nt)

    def _acc(vals):
        for k, v in enumerate(vals):
            o_ref[0, k, :, :] = o_ref[0, k, :, :] + jnp.sum(v)

    if needs_mask:
        last = num_tiles - 1

        @pl.when(g < last)
        def _steady():                 # hot path: no masking cost
            _acc(terms)

        @pl.when(g >= last)
        def _tail():
            # Covers both the partial final tile and fully-out-of-range
            # overshoot tiles on the second core.  All five terms are masked
            # with selects so DMA-pad garbage (NaN/Inf) cannot leak.
            col = g * tile + jax.lax.broadcasted_iota(jnp.int32, (1, 1, tile), 2)
            valid = col < q_total
            _acc(tuple(jnp.where(valid, v, 0.0) for v in terms))
    else:
        _acc(terms)


@functools.lru_cache(maxsize=None)
def _build_loss_fn(B, C, H, W, x_itemsize, t_itemsize, tile_lanes):
    HW = H * W
    # Sublane factor shared by logits and target so element pairing is kept.
    R = 8 if HW % 8 == 0 else 4 if HW % 4 == 0 else 2 if HW % 2 == 0 else 1
    Q = HW // R

    per_lane_in = B * R * (C * x_itemsize + t_itemsize)   # input bytes / lane col
    cap = _vmem_capacity_bytes()

    if tile_lanes is not None:
        tile_max = max(128, (int(tile_lanes) // 128) * 128)
    else:
        # Double-buffered blocks must fit a per-generation VMEM budget
        # (<= ~21 MiB on v7x's 64 MiB, <= 40 MiB on v5e/v6e's 128 MiB), and
        # each grid step should move ~8 MiB of HBM to amortize the ~0.35 us
        # per-step pipeline overhead while still overlapping DMA and compute.
        vmem_budget = max(4 << 20, min(cap // 3, 40 << 20))
        step_budget = 8 << 20
        tile_max = min(vmem_budget // (2 * per_lane_in),
                       step_budget // per_lane_in)
        tile_max = max(128, (tile_max // 128) * 128)

    if Q <= tile_max:
        tile, num_tiles = Q, 1                   # single full-extent block
    else:
        tile, num_tiles = tile_max, -(-Q // tile_max)

    num_cores = 2 if num_tiles >= 2 else 1       # use both TCs on v7x
    steps = -(-num_tiles // num_cores)
    overshoot = num_cores * steps > num_tiles
    needs_mask = overshoot or (num_tiles * tile != Q)

    blocks_bytes = 2 * per_lane_in * tile        # double-buffered in-blocks
    vmem_limit = int(max(16 << 20,
                         min(cap - (2 << 20),
                             max(32 << 20, blocks_bytes + (8 << 20)))))

    kernel = functools.partial(
        _loss_kernel, num_channels=C, tile=tile, q_total=Q,
        num_tiles=num_tiles, steps_per_core=steps, needs_mask=needs_mask)

    def _g(c, i):
        g = c * steps + i
        # Clamp overshoot tiles onto the last real block (their contribution
        # is masked to zero in-kernel) so no DMA ever goes out of bounds.
        return jnp.minimum(g, num_tiles - 1) if overshoot else g

    call = pl.pallas_call(
        kernel,
        out_shape=jax.ShapeDtypeStruct((num_cores, 5, 8, 128), jnp.float32),
        grid=(num_cores, steps),
        in_specs=[
            pl.BlockSpec((B, C, R, tile), lambda c, i: (0, 0, 0, _g(c, i))),
            pl.BlockSpec((B, R, tile), lambda c, i: (0, 0, _g(c, i))),
        ],
        out_specs=pl.BlockSpec((1, 5, 8, 128), lambda c, i: (c, 0, 0, 0)),
        compiler_params=pltpu.CompilerParams(
            dimension_semantics=("parallel", "arbitrary"),
            vmem_limit_bytes=vmem_limit),
    )

    n_total = float(B * HW)

    @jax.jit
    def run(logits, target):
        x = logits.reshape(B, C, R, Q)           # contiguous reshape: free
        t = target.reshape(B, R, Q)
        part = call(x, t)                        # (num_cores, 5, 8, 128)
        s = part[:, :, 0, 0].sum(axis=0)         # (5,) per-core partials merged
        s_t, s_p0nt, s_p1t, s_p0t2, s_p1nt2 = (s[k] for k in range(5))
        s_nt = n_total - s_t
        pos_loss = ((s_nt / s_p0nt - 1.0) + (s_t / s_p1t - 1.0)) * 0.5
        neg_loss = (s_p0t2 + s_p1nt2) * 0.5
        neg_term = jax.nn.sigmoid(jnp.log(jnp.log(neg_loss + 1.0) + 1.0) + 1.0)
        pos_term = jax.nn.sigmoid(pos_loss)
        return (pos_term + neg_term) * 0.5

    return run


def my_loss_with_edge_and_director(logits, target, *, tile_lanes=None):
    """logits: (B, C, H, W); target: (B, H, W) (float / int / bool).

    Returns the scalar f32 loss.  `tile_lanes` optionally overrides the
    auto-derived lane tile (used for testing the streaming / masking paths).
    """
    B, C, H, W = logits.shape
    assert C >= 2, "forward uses softmax channels 0 and 1"
    assert target.shape == (B, H, W)
    if jnp.issubdtype(target.dtype, jnp.bool_):
        target = target.astype(jnp.uint8)        # bool blocks are awkward; u8 is cheap
    fn = _build_loss_fn(B, C, H, W,
                        int(logits.dtype.itemsize), int(target.dtype.itemsize),
                        None if tile_lanes is None else int(tile_lanes))
    return fn(logits, target)


def reference_loss(logits, target):
    """Pure-JAX mirror of the PyTorch forward (for correctness checking)."""
    t = target.astype(jnp.float32)
    p = jax.nn.softmax(logits.astype(jnp.float32), axis=1)
    p0, p1 = p[:, 0], p[:, 1]
    nt = 1.0 - t
    pos1 = 1.0 / (jnp.sum(p0 * nt) / jnp.sum(nt)) - 1.0
    pos2 = 1.0 / (jnp.sum(p1 * t) / jnp.sum(t)) - 1.0
    pos_loss = (pos1 + pos2) / 2.0
    neg_loss = (jnp.sum((p0 * t) ** 2) + jnp.sum((p1 * nt) ** 2)) / 2.0
    neg_term = jax.nn.sigmoid(jnp.log(jnp.log(neg_loss + 1.0) + 1.0) + 1.0)
    pos_term = jax.nn.sigmoid(pos_loss)
    return (pos_term + neg_term) / 2.0


if __name__ == "__main__":
    key = jax.random.PRNGKey(0)
    ks = jax.random.split(key, 12)

    def check(logits, target, tile_lanes=None):
        out = jax.block_until_ready(
            my_loss_with_edge_and_director(logits, target, tile_lanes=tile_lanes))
        ref = reference_loss(logits, target)
        np.testing.assert_allclose(np.asarray(out), np.asarray(ref),
                                   rtol=1e-4, atol=1e-4)

    # 1) Canonical binary case: C==2, single full-extent block, R=8.
    logits = jax.random.normal(ks[0], (2, 2, 16, 16), dtype=jnp.float32)
    target = (jax.random.uniform(ks[1], (2, 16, 16)) > 0.5).astype(jnp.float32)
    check(logits, target)

    # 2) Two tiles across the two-"core" parallel axis + masked partial tile.
    logits = jax.random.normal(ks[2], (2, 2, 40, 40), dtype=jnp.float32)
    target = (jax.random.uniform(ks[3], (2, 40, 40)) > 0.5).astype(jnp.float32)
    check(logits, target, tile_lanes=128)

    # 3) Odd tile count: overshoot tile on core 1 (clamped + fully masked).
    logits = jax.random.normal(ks[4], (2, 2, 48, 48), dtype=jnp.float32)
    target = (jax.random.uniform(ks[5], (2, 48, 48)) > 0.5).astype(jnp.float32)
    check(logits, target, tile_lanes=128)

    # 4) General-C softmax fallback (module only reads channels 0 and 1).
    logits = jax.random.normal(ks[6], (2, 4, 16, 16), dtype=jnp.float32)
    target = (jax.random.uniform(ks[7], (2, 16, 16)) > 0.5).astype(jnp.float32)
    check(logits, target)

    # 5) H*W not a multiple of 8 -> R=1 fallback layout.
    logits = jax.random.normal(ks[8], (2, 2, 15, 15), dtype=jnp.float32)
    target = (jax.random.uniform(ks[9], (2, 15, 15)) > 0.5).astype(jnp.float32)
    check(logits, target)

    # 6) Narrow HBM dtypes end-to-end: bf16 logits + uint8 target, streamed.
    logits = jax.random.normal(ks[10], (2, 2, 32, 64), dtype=jnp.bfloat16)
    target = (jax.random.uniform(ks[11], (2, 32, 64)) > 0.5).astype(jnp.uint8)
    check(logits, target, tile_lanes=128)

    print("KERNEL_OK")
</pallas_src>

<mosaic_0001>
module attributes {stable_mosaic.version = 11 : i64} {
  func.func @_loss_kernel(%arg0: i32, %arg1: i32, %arg2: memref<2x2x8x32xf32, #tpu.memory_space<vmem>>, %arg3: memref<2x8x32xf32, #tpu.memory_space<vmem>>, %arg4: memref<1x5x8x128xf32, #tpu.memory_space<vmem>>) attributes {dimension_semantics = [#tpu.dimension_semantics<parallel>, #tpu.dimension_semantics<arbitrary>], iteration_bounds = array<i64: 1, 1>, scalar_prefetch = 0 : i64, scratch_operands = 0 : i64, tpu.core_type = #tpu.core_type<tc>, window_params = [{transform_indices = @transform_0, window_bounds = array<i64: 2, 2, 8, 32>}, {transform_indices = @transform_1, window_bounds = array<i64: 2, 8, 32>}, {transform_indices = @transform_2, window_bounds = array<i64: 1, 5, 8, 128>}]} {
    %c0_i32 = arith.constant 0 : i32
    %0 = arith.cmpi eq, %arg1, %c0_i32 : i32
    %1 = arith.extui %0 : i1 to i32
    %c0_i32_0 = arith.constant 0 : i32
    %2 = arith.cmpi ne, %1, %c0_i32_0 : i32
    scf.if %2 {
      %cst_55 = arith.constant 0.000000e+00 : f32
      %79 = vector.broadcast %cst_55 : f32 to vector<1x5x8x128xf32>
      %c0_56 = arith.constant 0 : index
      %c0_57 = arith.constant 0 : index
      %c0_58 = arith.constant 0 : index
      %c0_59 = arith.constant 0 : index
      %80 = vector.load %arg4[%c0_56, %c0_57, %c0_58, %c0_59] : memref<1x5x8x128xf32, #tpu.memory_space<vmem>>, vector<1x5x8x128xf32>
      tpu.vector_store %arg4[%c0_56, %c0_57, %c0_58, %c0_59], %79 {strides = array<i32>} : memref<1x5x8x128xf32, #tpu.memory_space<vmem>>, vector<1x5x8x128xf32>,
    } else {
    }
    %c0 = arith.constant 0 : index
    %c0_1 = arith.constant 0 : index
    %c0_2 = arith.constant 0 : index
    %3 = vector.load %arg3[%c0, %c0_1, %c0_2] : memref<2x8x32xf32, #tpu.memory_space<vmem>>, vector<2x8x32xf32>
    %cst = arith.constant 1.000000e+00 : f32
    %4 = vector.broadcast %cst : f32 to vector<2x8x32xf32>
    %5 = arith.subf %4, %3 : vector<2x8x32xf32>
    %c0_3 = arith.constant 0 : index
    %c0_4 = arith.constant 0 : index
    %c0_5 = arith.constant 0 : index
    %c0_6 = arith.constant 0 : index
    %6 = vector.load %arg2[%c0_3, %c0_4, %c0_5, %c0_6] : memref<2x2x8x32xf32, #tpu.memory_space<vmem>>, vector<2x1x8x32xf32>
    %7 = vector.shape_cast %6 : vector<2x1x8x32xf32> to vector<2x8x32xf32>
    %c0_7 = arith.constant 0 : index
    %c1 = arith.constant 1 : index
    %c0_8 = arith.constant 0 : index
    %c0_9 = arith.constant 0 : index
    %8 = vector.load %arg2[%c0_7, %c1, %c0_8, %c0_9] : memref<2x2x8x32xf32, #tpu.memory_space<vmem>>, vector<2x1x8x32xf32>
    %9 = vector.shape_cast %8 : vector<2x1x8x32xf32> to vector<2x8x32xf32>
    %10 = arith.subf %7, %9 : vector<2x8x32xf32>
    %cst_10 = arith.constant 5.000000e-01 : f32
    %11 = vector.broadcast %cst_10 : f32 to vector<2x8x32xf32>
    %12 = arith.mulf %11, %10 : vector<2x8x32xf32>
    %13 = math.tanh %12 : vector<2x8x32xf32>
    %cst_11 = arith.constant 5.000000e-01 : f32
    %14 = vector.broadcast %cst_11 : f32 to vector<2x8x32xf32>
    %15 = arith.mulf %14, %13 : vector<2x8x32xf32>
    %cst_12 = arith.constant 5.000000e-01 : f32
    %16 = vector.broadcast %cst_12 : f32 to vector<2x8x32xf32>
    %17 = arith.addf %15, %16 : vector<2x8x32xf32>
    %18 = arith.mulf %17, %3 : vector<2x8x32xf32>
    %19 = arith.subf %17, %18 : vector<2x8x32xf32>
    %20 = arith.subf %3, %18 : vector<2x8x32xf32>
    %21 = arith.subf %5, %19 : vector<2x8x32xf32>
    %22 = arith.mulf %18, %18 : vector<2x8x32xf32>
    %23 = arith.mulf %21, %21 : vector<2x8x32xf32>
    %c0_13 = arith.constant 0 : index
    %c0_14 = arith.constant 0 : index
    %c0_15 = arith.constant 0 : index
    %c0_16 = arith.constant 0 : index
    %24 = vector.load %arg4[%c0_13, %c0_14, %c0_15, %c0_16] : memref<1x5x8x128xf32, #tpu.memory_space<vmem>>, vector<1x1x8x128xf32>
    %25 = vector.shape_cast %24 : vector<1x1x8x128xf32> to vector<8x128xf32>
    %26 = vector.shape_cast %3 : vector<2x8x32xf32> to vector<1x2x8x32xf32>
    %cst_17 = arith.constant dense<0.000000e+00> : vector<1xf32>
    %27 = vector.multi_reduction <add>, %26, %cst_17 [1, 2, 3] : vector<1x2x8x32xf32> to vector<1xf32>
    %28 = vector.shape_cast %27 : vector<1xf32> to vector<1x1x1x1xf32>
    %29 = vector.extract %28[0, 0, 0, 0] : f32 from vector<1x1x1x1xf32>
    %30 = vector.broadcast %29 : f32 to vector<8x128xf32>
    %31 = arith.addf %25, %30 : vector<8x128xf32>
    %c0_18 = arith.constant 0 : index
    %c0_19 = arith.constant 0 : index
    %c0_20 = arith.constant 0 : index
    %c0_21 = arith.constant 0 : index
    %32 = vector.load %arg4[%c0_18, %c0_19, %c0_20, %c0_21] : memref<1x5x8x128xf32, #tpu.memory_space<vmem>>, vector<1x1x8x128xf32>
    %33 = vector.shape_cast %32 : vector<1x1x8x128xf32> to vector<8x128xf32>
    %34 = vector.shape_cast %31 : vector<8x128xf32> to vector<1x1x8x128xf32>
    tpu.vector_store %arg4[%c0_18, %c0_19, %c0_20, %c0_21], %34 {strides = array<i32>} : memref<1x5x8x128xf32, #tpu.memory_space<vmem>>, vector<1x1x8x128xf32>,
    %c0_22 = arith.constant 0 : index
    %c1_23 = arith.constant 1 : index
    %c0_24 = arith.constant 0 : index
    %c0_25 = arith.constant 0 : index
    %35 = vector.load %arg4[%c0_22, %c1_23, %c0_24, %c0_25] : memref<1x5x8x128xf32, #tpu.memory_space<vmem>>, vector<1x1x8x128xf32>
    %36 = vector.shape_cast %35 : vector<1x1x8x128xf32> to vector<8x128xf32>
    %37 = vector.shape_cast %19 : vector<2x8x32xf32> to vector<1x2x8x32xf32>
    %cst_26 = arith.constant dense<0.000000e+00> : vector<1xf32>
    %38 = vector.multi_reduction <add>, %37, %cst_26 [1, 2, 3] : vector<1x2x8x32xf32> to vector<1xf32>
    %39 = vector.shape_cast %38 : vector<1xf32> to vector<1x1x1x1xf32>
    %40 = vector.extract %39[0, 0, 0, 0] : f32 from vector<1x1x1x1xf32>
    %41 = vector.broadcast %40 : f32 to vector<8x128xf32>
    %42 = arith.addf %36, %41 : vector<8x128xf32>
    %c0_27 = arith.constant 0 : index
    %c1_28 = arith.constant 1 : index
    %c0_29 = arith.constant 0 : index
    %c0_30 = arith.constant 0 : index
    %43 = vector.load %arg4[%c0_27, %c1_28, %c0_29, %c0_30] : memref<1x5x8x128xf32, #tpu.memory_space<vmem>>, vector<1x1x8x128xf32>
    %44 = vector.shape_cast %43 : vector<1x1x8x128xf32> to vector<8x128xf32>
    %45 = vector.shape_cast %42 : vector<8x128xf32> to vector<1x1x8x128xf32>
    tpu.vector_store %arg4[%c0_27, %c1_28, %c0_29, %c0_30], %45 {strides = array<i32>} : memref<1x5x8x128xf32, #tpu.memory_space<vmem>>, vector<1x1x8x128xf32>,
    %c0_31 = arith.constant 0 : index
    %c2 = arith.constant 2 : index
    %c0_32 = arith.constant 0 : index
    %c0_33 = arith.constant 0 : index
    %46 = vector.load %arg4[%c0_31, %c2, %c0_32, %c0_33] : memref<1x5x8x128xf32, #tpu.memory_space<vmem>>, vector<1x1x8x128xf32>
    %47 = vector.shape_cast %46 : vector<1x1x8x128xf32> to vector<8x128xf32>
    %48 = vector.shape_cast %20 : vector<2x8x32xf32> to vector<1x2x8x32xf32>
    %cst_34 = arith.constant dense<0.000000e+00> : vector<1xf32>
    %49 = vector.multi_reduction <add>, %48, %cst_34 [1, 2, 3] : vector<1x2x8x32xf32> to vector<1xf32>
    %50 = vector.shape_cast %49 : vector<1xf32> to vector<1x1x1x1xf32>
    %51 = vector.extract %50[0, 0, 0, 0] : f32 from vector<1x1x1x1xf32>
    %52 = vector.broadcast %51 : f32 to vector<8x128xf32>
    %53 = arith.addf %47, %52 : vector<8x128xf32>
    %c0_35 = arith.constant 0 : index
    %c2_36 = arith.constant 2 : index
    %c0_37 = arith.constant 0 : index
    %c0_38 = arith.constant 0 : index
    %54 = vector.load %arg4[%c0_35, %c2_36, %c0_37, %c0_38] : memref<1x5x8x128xf32, #tpu.memory_space<vmem>>, vector<1x1x8x128xf32>
    %55 = vector.shape_cast %54 : vector<1x1x8x128xf32> to vector<8x128xf32>
    %56 = vector.shape_cast %53 : vector<8x128xf32> to vector<1x1x8x128xf32>
    tpu.vector_store %arg4[%c0_35, %c2_36, %c0_37, %c0_38], %56 {strides = array<i32>} : memref<1x5x8x128xf32, #tpu.memory_space<vmem>>, vector<1x1x8x128xf32>,
    %c0_39 = arith.constant 0 : index
    %c3 = arith.constant 3 : index
    %c0_40 = arith.constant 0 : index
    %c0_41 = arith.constant 0 : index
    %57 = vector.load %arg4[%c0_39, %c3, %c0_40, %c0_41] : memref<1x5x8x128xf32, #tpu.memory_space<vmem>>, vector<1x1x8x128xf32>
    %58 = vector.shape_cast %57 : vector<1x1x8x128xf32> to vector<8x128xf32>
    %59 = vector.shape_cast %22 : vector<2x8x32xf32> to vector<1x2x8x32xf32>
    %cst_42 = arith.constant dense<0.000000e+00> : vector<1xf32>
    %60 = vector.multi_reduction <add>, %59, %cst_42 [1, 2, 3] : vector<1x2x8x32xf32> to vector<1xf32>
    %61 = vector.shape_cast %60 : vector<1xf32> to vector<1x1x1x1xf32>
    %62 = vector.extract %61[0, 0, 0, 0] : f32 from vector<1x1x1x1xf32>
    %63 = vector.broadcast %62 : f32 to vector<8x128xf32>
    %64 = arith.addf %58, %63 : vector<8x128xf32>
    %c0_43 = arith.constant 0 : index
    %c3_44 = arith.constant 3 : index
    %c0_45 = arith.constant 0 : index
    %c0_46 = arith.constant 0 : index
    %65 = vector.load %arg4[%c0_43, %c3_44, %c0_45, %c0_46] : memref<1x5x8x128xf32, #tpu.memory_space<vmem>>, vector<1x1x8x128xf32>
    %66 = vector.shape_cast %65 : vector<1x1x8x128xf32> to vector<8x128xf32>
    %67 = vector.shape_cast %64 : vector<8x128xf32> to vector<1x1x8x128xf32>
    tpu.vector_store %arg4[%c0_43, %c3_44, %c0_45, %c0_46], %67 {strides = array<i32>} : memref<1x5x8x128xf32, #tpu.memory_space<vmem>>, vector<1x1x8x128xf32>,
    %c0_47 = arith.constant 0 : index
    %c4 = arith.constant 4 : index
    %c0_48 = arith.constant 0 : index
    %c0_49 = arith.constant 0 : index
    %68 = vector.load %arg4[%c0_47, %c4, %c0_48, %c0_49] : memref<1x5x8x128xf32, #tpu.memory_space<vmem>>, vector<1x1x8x128xf32>
    %69 = vector.shape_cast %68 : vector<1x1x8x128xf32> to vector<8x128xf32>
    %70 = vector.shape_cast %23 : vector<2x8x32xf32> to vector<1x2x8x32xf32>
    %cst_50 = arith.constant dense<0.000000e+00> : vector<1xf32>
    %71 = vector.multi_reduction <add>, %70, %cst_50 [1, 2, 3] : vector<1x2x8x32xf32> to vector<1xf32>
    %72 = vector.shape_cast %71 : vector<1xf32> to vector<1x1x1x1xf32>
    %73 = vector.extract %72[0, 0, 0, 0] : f32 from vector<1x1x1x1xf32>
    %74 = vector.broadcast %73 : f32 to vector<8x128xf32>
    %75 = arith.addf %69, %74 : vector<8x128xf32>
    %c0_51 = arith.constant 0 : index
    %c4_52 = arith.constant 4 : index
    %c0_53 = arith.constant 0 : index
    %c0_54 = arith.constant 0 : index
    %76 = vector.load %arg4[%c0_51, %c4_52, %c0_53, %c0_54] : memref<1x5x8x128xf32, #tpu.memory_space<vmem>>, vector<1x1x8x128xf32>
    %77 = vector.shape_cast %76 : vector<1x1x8x128xf32> to vector<8x128xf32>
    %78 = vector.shape_cast %75 : vector<8x128xf32> to vector<1x1x8x128xf32>
    tpu.vector_store %arg4[%c0_51, %c4_52, %c0_53, %c0_54], %78 {strides = array<i32>} : memref<1x5x8x128xf32, #tpu.memory_space<vmem>>, vector<1x1x8x128xf32>,
    return
  }
  func.func @transform_0(%arg0: i32, %arg1: i32) -> (i32, i32, i32, i32) {
    %c1_i32 = arith.constant 1 : i32
    %0 = arith.muli %arg0, %c1_i32 : i32
    %1 = arith.addi %0, %arg1 : i32
    %c0_i32 = arith.constant 0 : i32
    %c0_i32_0 = arith.constant 0 : i32
    %c0_i32_1 = arith.constant 0 : i32
    %c0_i32_2 = arith.constant 0 : i32
    return %c0_i32, %c0_i32_0, %c0_i32_1, %1 : i32, i32, i32, i32
  }
  func.func @transform_1(%arg0: i32, %arg1: i32) -> (i32, i32, i32) {
    %c1_i32 = arith.constant 1 : i32
    %0 = arith.muli %arg0, %c1_i32 : i32
    %1 = arith.addi %0, %arg1 : i32
    %c0_i32 = arith.constant 0 : i32
    %c0_i32_0 = arith.constant 0 : i32
    %c0_i32_1 = arith.constant 0 : i32
    return %c0_i32, %c0_i32_0, %1 : i32, i32, i32
  }
  func.func @transform_2(%arg0: i32, %arg1: i32) -> (i32, i32, i32, i32) {
    %c0_i32 = arith.constant 0 : i32
    %c0_i32_0 = arith.constant 0 : i32
    %c0_i32_1 = arith.constant 0 : i32
    %c0_i32_2 = arith.constant 0 : i32
    return %arg0, %c0_i32, %c0_i32_0, %c0_i32_1 : i32, i32, i32, i32
  }
}

</mosaic_0001>

<llo_original>
// kernel: run.1
$region0: #{run.1}
  #allocation0 [shape = 'u32[]', space=smem, size = 0x4, offset = 0x4, fixed_abs, tag = 'smem constant byte address 0x4 - core index']
  #allocation1 [shape = 'u32[144,128]{1,0:T(1,128)}', space=vmem, size = 0x12000, scoped, tag = 'internal scratch']
  %s0 = inlined_call_operand.vmem [shape: f32[2,2,8,32], index: 0, kind: input, shape index: {}]
  %s1 = inlined_call_operand.vmem [shape: f32[2,8,32], index: 1, kind: input, shape index: {}]
  %s2 = inlined_call_operand.vmem [shape: f32[1,5,8,128], index: 2, kind: output, shape index: {}]
  %s3 = sld [smem:[#allocation0]]
  $region22: #{run.1} parent=0
    _
  %s5 = ssub.s32 1, %s3
  %s6 = scalar_select 0, %s5, %s3
  // Predicated region
  $region2: #{run.1} parent=0 // pred_check
    _
  $region3: #{run.1} parent=0 // pred_check_branch
    %8 = sbr.rel (0) target = $region5
  $region4: #{run.1} parent=0 // pred_region
    %s9 = sadd.s32 0, 0
    %p10 = scmp.lt.s32.totalorder %s9, 0
    %s11 = scalar_select %p10, %s9, 0
    %s12 = smul.addr %s11, 8
    %s13 = scalar_lea.vmem %s0, %s12
    %s14 = sadd.s32 0, 0
  $region5: #{run.1} parent=0 // pred_fallthru
    _
  // Predicated region
  $region6: #{run.1} parent=0 // pred_check
    _
  $region7: #{run.1} parent=0 // pred_check_branch
    %16 = sbr.rel (0) target = $region9
  $region8: #{run.1} parent=0 // pred_region
    %s17 = sadd.s32 0, 0
    %p18 = scmp.lt.s32.totalorder %s17, 0
    %s19 = scalar_select %p18, %s17, 0
    %s20 = smul.addr %s19, 8
    %s21 = scalar_lea.vmem %s1, %s20
    %s22 = sadd.s32 0, 0
  $region9: #{run.1} parent=0 // pred_fallthru
    _
  %s23 = sadd.s32 0, 0
  %p24 = scmp.lt.s32.totalorder %s23, 0
  %s25 = scalar_select %p24, %s23, 0
  %s26 = smul.addr %s25, 8
  %s27 = scalar_lea.vmem %s0, %s26
  %s28 = sadd.s32 0, 0
  %p29 = scmp.lt.s32.totalorder %s28, 0
  %s30 = scalar_select %p29, %s28, 0
  %s31 = smul.addr %s30, 8
  %s32 = scalar_lea.vmem %s1, %s31
  %s33 = sadd.s32 0, 0
  %p34 = scmp.lt.s32.totalorder %s33, 0
  %s35 = scalar_select %p34, %s33, 0
  %s36 = smul.addr %s35, 8
  %s37 = scalar_lea.vmem %s0, %s36
  %s38 = sadd.s32 0, 0
  %s39 = sadd.s32 0, 0
  %p40 = scmp.lt.s32.totalorder %s39, 0
  %s41 = scalar_select %p40, %s39, 0
  %s42 = smul.addr %s41, 8
  %s43 = scalar_lea.vmem %s1, %s42
  %s44 = sadd.s32 0, 0
  %p45 = scmp.eq.s32.totalorder 0, 0
  // Predicated region
  $region10: #{run.1} parent=0 // pred_check
    %p46 = pneg %p45
  $region11: #{run.1} parent=0 // pred_check_branch
    %48 = sbr.rel (%p46) target = $region13
  $region12: #{run.1} parent=0 // pred_region
    %49 = vst [vmem:[%s2] sm:$0xff] 0.0
    %50 = vst [vmem:[%s2 + $0x8] sm:$0xff] 0.0
    %51 = vst [vmem:[%s2 + $0x10] sm:$0xff] 0.0
    %52 = vst [vmem:[%s2 + $0x18] sm:$0xff] 0.0
    %53 = vst [vmem:[%s2 + $0x20] sm:$0xff] 0.0
  $region13: #{run.1} parent=0 // pred_fallthru
    _
  %v54 = vld [vmem:[%s43] sm:$0xff]
  %v55 = vld [vmem:[%s43 + $0x8] sm:$0xff]
  %v56 = vsub.f32 1.0, %v54
  %v57 = vsub.f32 1.0, %v55
  %v58 = vld [vmem:[%s37] sm:$0xff]
  %v59 = vld [vmem:[%s37 + $0x10] sm:$0xff]
  %s60 = scalar_lea.vmem %s37, 8
  %v61 = vld [vmem:[%s60] sm:$0xff]
  %v62 = vld [vmem:[%s60 + $0x10] sm:$0xff]
  %v63 = vsub.f32 %v58, %v61
  %v64 = vsub.f32 %v59, %v62
  %v65 = vmul.f32 %v63, 0.5
  %v66 = vmul.f32 %v64, 0.5
  %v67 = vtanh.pop %v65
  %v68 = vtanh.pop %v66
  %v69 = vmul.f32 %v67, 0.5
  %v70 = vmul.f32 %v68, 0.5
  %v71 = vadd.f32 %v69, 0.5
  %v72 = vadd.f32 %v70, 0.5
  %v73 = vmul.f32 %v71, %v54
  %v74 = vmul.f32 %v72, %v55
  %v75 = vsub.f32 %v71, %v73
  %v76 = vsub.f32 %v72, %v74
  %v77 = vsub.f32 %v54, %v73
  %v78 = vsub.f32 %v55, %v74
  %v79 = vsub.f32 %v56, %v75
  %v80 = vsub.f32 %v57, %v76
  %v81 = vmul.f32 %v73, %v73
  %v82 = vmul.f32 %v74, %v74
  %v83 = vmul.f32 %v79, %v79
  %v84 = vmul.f32 %v80, %v80
  %v85 = vld [vmem:[%s2] sm:$0xff]
  %vm86 = vcmask 261120
  %v87 = vsel %vm86, %v54, 0.0
  %v88 = vsel %vm86, %v55, 0.0
  %v89 = vadd.f32 %v87, %v88
  %90 = vadd.xlane.f32.xlu0 %v89
  %v91 = vpop.xlane.xlu0 %90
  %v92 = vrot.slane %v91, 4
  %v93 = vadd.f32 %v91, %v92
  %v94 = vrot.slane %v93, 2
  %v95 = vadd.f32 %v93, %v94
  %v96 = vrot.slane %v95, 1
  %v97 = vadd.f32 %v95, %v96
  %s98 = vtos %v97
  %v99 = vstv %s98
  %v100 = vadd.f32 %v85, %v99
  %101 = vst [vmem:[%s2] sm:$0xff] %v100
  %s102 = scalar_lea.vmem %s2, 8
  %v103 = vld [vmem:[%s102] sm:$0xff]
  %v104 = vsel %vm86, %v75, 0.0
  %v105 = vsel %vm86, %v76, 0.0
  %v106 = vadd.f32 %v104, %v105
  %107 = vadd.xlane.f32.xlu0 %v106
  %v108 = vpop.xlane.xlu0 %107
  %v109 = vrot.slane %v108, 4
  %v110 = vadd.f32 %v108, %v109
  %v111 = vrot.slane %v110, 2
  %v112 = vadd.f32 %v110, %v111
  %v113 = vrot.slane %v112, 1
  %v114 = vadd.f32 %v112, %v113
  %s115 = vtos %v114
  %v116 = vstv %s115
  %v117 = vadd.f32 %v103, %v116
  %118 = vst [vmem:[%s102] sm:$0xff] %v117
  %s119 = scalar_lea.vmem %s2, 16
  %v120 = vld [vmem:[%s119] sm:$0xff]
  %v121 = vsel %vm86, %v77, 0.0
  %v122 = vsel %vm86, %v78, 0.0
  %v123 = vadd.f32 %v121, %v122
  %124 = vadd.xlane.f32.xlu0 %v123
  %v125 = vpop.xlane.xlu0 %124
  %v126 = vrot.slane %v125, 4
  %v127 = vadd.f32 %v125, %v126
  %v128 = vrot.slane %v127, 2
  %v129 = vadd.f32 %v127, %v128
  %v130 = vrot.slane %v129, 1
  %v131 = vadd.f32 %v129, %v130
  %s132 = vtos %v131
  %v133 = vstv %s132
  %v134 = vadd.f32 %v120, %v133
  %135 = vst [vmem:[%s119] sm:$0xff] %v134
  %s136 = scalar_lea.vmem %s2, 24
  %v137 = vld [vmem:[%s136] sm:$0xff]
  %v138 = vsel %vm86, %v81, 0.0
  %v139 = vsel %vm86, %v82, 0.0
  %v140 = vadd.f32 %v138, %v139
  %141 = vadd.xlane.f32.xlu0 %v140
  %v142 = vpop.xlane.xlu0 %141
  %v143 = vrot.slane %v142, 4
  %v144 = vadd.f32 %v142, %v143
  %v145 = vrot.slane %v144, 2
  %v146 = vadd.f32 %v144, %v145
  %v147 = vrot.slane %v146, 1
  %v148 = vadd.f32 %v146, %v147
  %s149 = vtos %v148
  %v150 = vstv %s149
  %v151 = vadd.f32 %v137, %v150
  %152 = vst [vmem:[%s136] sm:$0xff] %v151
  %s153 = scalar_lea.vmem %s2, 32
  %v154 = vld [vmem:[%s153] sm:$0xff]
  %v155 = vsel %vm86, %v83, 0.0
  %v156 = vsel %vm86, %v84, 0.0
  %v157 = vadd.f32 %v155, %v156
  %158 = vadd.xlane.f32.xlu0 %v157
  %v159 = vpop.xlane.xlu0 %158
  %v160 = vrot.slane %v159, 4
  %v161 = vadd.f32 %v159, %v160
  %v162 = vrot.slane %v161, 2
  %v163 = vadd.f32 %v161, %v162
  %v164 = vrot.slane %v163, 1
  %v165 = vadd.f32 %v163, %v164
  %s166 = vtos %v165
  %v167 = vstv %s166
  %v168 = vadd.f32 %v154, %v167
  %169 = vst [vmem:[%s153] sm:$0xff] %v168
  // Predicated region
  $region14: #{run.1} parent=0 // pred_check
    _
  $region15: #{run.1} parent=0 // pred_check_branch
    %171 = sbr.rel (0) target = $region17
  $region16: #{run.1} parent=0 // pred_region
    _
  $region17: #{run.1} parent=0 // pred_fallthru
    _
  // Predicated region
  $region18: #{run.1} parent=0 // pred_check
    _
  $region19: #{run.1} parent=0 // pred_check_branch
    %173 = sbr.rel (0) target = $region21
  $region20: #{run.1} parent=0 // pred_region
    _
  $region21: #{run.1} parent=0 // pred_fallthru
    _

</llo_original>
